<compile_context>
chip_gen: v7x
topology: tpu7x:2x2x1
jax: 0.10.0
libtpu: 0.0.40
codegen_flags: <defaults>
</compile_context>

<pallas_src>
import math
from functools import partial

import numpy as np
import jax
import jax.numpy as jnp
from jax import lax
from jax.experimental import pallas as pl
from jax.experimental.pallas import tpu as pltpu


def _round_up(x, m):
    return ((x + m - 1) // m) * m


def _choose_length_tile(L, c_pad, s_times_o, taps, w_bytes,
                        vmem_budget=40 << 20, cap=2048):
    """Largest 128-multiple length tile whose per-step footprint fits the VMEM budget."""
    if L <= 256:
        return L                       # single tile; block dims == full dims (legal)
    avail = max(vmem_budget - 2 * w_bytes, 2 << 20)
    cand = min(cap, _round_up(L, 128))
    while cand > 128:
        per_step = (2 * c_pad * (cand + taps - 1) * 2   # input slab (x2 buffers, bf16)
                    + 2 * s_times_o * cand * 2          # output tile (x2 buffers, bf16)
                    + taps * c_pad * cand * 2           # im2col value (bf16)
                    + s_times_o * cand * 4)             # f32 accumulator
        if per_step <= avail:
            break
        cand -= 128
    return max(cand, 128)


def _make_kernel(taps, lt):
    def kernel(x_ref, w_ref, o_ref):
        # x_ref: (1, 1, C_pad, lt + taps - 1)  bf16  halo'd input slab
        # w_ref: (s*O, taps*C_pad)             bf16  folded polyphase weights (+bias chan)
        # o_ref: (1, 1, s*O, lt)               bf16  phase-major output tile
        xw = x_ref[0, 0]
        # im2col: every tap is a full-width static slice of the halo'd tile — no masked
        # partial VMEM stores, no scratch. Contraction depth = taps * C_pad (+ bias chan).
        xcol = jnp.concatenate([xw[:, t:t + lt] for t in range(taps)], axis=0)
        acc = jnp.dot(w_ref[...], xcol, preferred_element_type=jnp.float32)
        o_ref[0, 0] = acc.astype(o_ref.dtype)
    return kernel


@partial(jax.jit,
         static_argnames=("d_min", "taps", "s", "out_channels", "c_real", "c_pad",
                          "length_tile"))
def upsample_conv1d_polyphase(x, in_feature, w_mat, *, d_min, taps, s,
                              out_channels, c_real, c_pad, length_tile=None):
    """cat(x, f) -> nearest-upsample(s) -> Conv1d(K, padding='same'), via polyphase."""
    n, _, L = x.shape
    s_o = s * out_channels
    d_max = d_min + taps - 1

    if length_tile is None:
        length_tile = _choose_length_tile(L, c_pad, s_o, taps,
                                          w_bytes=w_mat.size * 2)
    lt = int(length_tile)
    n_l = -(-L // lt)                      # cdiv
    L_pad = n_l * lt
    w_in = lt + taps - 1

    # One fused XLA pass over the (small) input side: channel concat, channel zero-pad,
    # bias ("ones") channel, 'same' zero-pad + tail pad along length, bf16 cast, and the
    # halo'd per-tile slab gather. Each kernel block is then plain and non-overlapping.
    xc = jnp.concatenate([x, in_feature], axis=1)
    pad_left = -d_min
    pad_right = (L_pad - L) + d_max
    xc_p = jnp.pad(xc, ((0, 0), (0, c_pad - c_real), (pad_left, pad_right)))
    xc_p = xc_p.at[:, c_real, :].set(1.0)           # bias channel == 1 everywhere
    xc_p = xc_p.astype(jnp.bfloat16)
    idx = np.arange(n_l)[:, None] * lt + np.arange(w_in)[None, :]        # (n_l, w_in)
    slabs = jnp.transpose(xc_p[:, :, idx], (0, 2, 1, 3))                 # (N,n_l,C_pad,w_in)

    out_pm = pl.pallas_call(
        _make_kernel(taps, lt),
        out_shape=jax.ShapeDtypeStruct((n, n_l, s_o, lt), jnp.bfloat16),
        grid=(n, n_l),
        in_specs=[
            pl.BlockSpec((1, 1, c_pad, w_in), lambda b, l: (b, l, 0, 0)),
            pl.BlockSpec((s_o, taps * c_pad), lambda b, l: (0, 0)),
        ],
        out_specs=pl.BlockSpec((1, 1, s_o, lt), lambda b, l: (b, l, 0, 0)),
        compiler_params=pltpu.CompilerParams(
            dimension_semantics=("parallel", "parallel"),
            # Sized for v7x's 64 MiB physical VMEM; on v5e/v6e (128 MiB) this can be
            # raised to 64-100 MiB together with a larger length tile.
            vmem_limit_bytes=48 * 1024 * 1024,
        ),
    )(slabs, w_mat)

    # Phase interleave: out_pm[n, l, p*O + o, j] == y[n, o, s*(l*lt + j) + p].
    # The 5-D reshape is free; transpose + slice + f32 cast is a single fused XLA pass
    # over bf16 staging data (half the HBM bytes of an f32 transpose).
    # TODO(synk): fuse into the kernel with lane-strided stores when Mosaic supports them.
    out5 = out_pm.reshape(n, n_l, s, out_channels, lt)
    y = jnp.transpose(out5, (0, 3, 1, 4, 2)).reshape(n, out_channels, L_pad * s)
    return y[:, :, : L * s].astype(jnp.float32)


class Upsample1DLayerMulti:
    """JAX/Pallas port of the PyTorch module (forward semantics preserved)."""

    def __init__(self, in_channels, out_channels, kernel_size, stride,
                 padding=11, upsample=None, output_padding=1, *, key):
        assert stride == 1, "Conv1d(padding='same') requires stride=1"
        s = int(upsample)
        self.upsample = s
        self.in_channels = in_channels
        self.out_channels = out_channels
        self.kernel_size = kernel_size

        # deterministic init mimicking nn.Conv1d's default uniform(+-1/sqrt(fan_in))
        k1, k2 = jax.random.split(key)
        bound = 1.0 / math.sqrt(in_channels * kernel_size)
        self.weight = jax.random.uniform(
            k1, (out_channels, in_channels, kernel_size), jnp.float32, -bound, bound)
        self.bias = jax.random.uniform(
            k2, (out_channels,), jnp.float32, -bound, bound)

        # --- polyphase fold: (nearest-upsample s) ∘ ('same' conv, K taps) -------------
        # y[n,o,s*q+p] = sum_k sum_c W[o,c,k] * xc[n,c, q + (p+k-left)//s]  (zero outside)
        K = kernel_size
        left = (K - 1) // 2                       # PyTorch 'same' left pad
        d_of = lambda p, k: (p + k - left) // s   # folded input shift of (phase, tap)
        self.d_min = d_of(0, 0)
        d_max = d_of(s - 1, K - 1)
        self.taps = d_max - self.d_min + 1

        # channel-padded contraction layout: [C real channels | 1 bias channel | zero pad]
        C = in_channels
        self.c_pad = _round_up(C + 1, 8)
        w_poly = np.zeros((s, out_channels, self.taps, self.c_pad), np.float32)
        w_np = np.asarray(self.weight)
        for p in range(s):
            for k in range(K):
                w_poly[p, :, d_of(p, k) - self.d_min, :C] += w_np[:, :, k]
        # bias folded into the constant-one channel via tap 0 (added exactly once/output)
        w_poly[:, :, 0, C] = np.asarray(self.bias)[None, :]
        # rows: p*O + o (phase-major);  cols: t*C_pad + c  — matches the kernel's im2col
        self.w_mat = jnp.asarray(
            w_poly.reshape(s * out_channels, self.taps * self.c_pad),
            dtype=jnp.bfloat16)

    def __call__(self, x, in_feature, *, length_tile=None):
        assert x.shape[1] + in_feature.shape[1] == self.in_channels
        return upsample_conv1d_polyphase(
            x, in_feature, self.w_mat,
            d_min=self.d_min, taps=self.taps, s=self.upsample,
            out_channels=self.out_channels, c_real=self.in_channels,
            c_pad=self.c_pad, length_tile=length_tile)

    # pure-JAX reference (original formulation) for correctness checking
    def reference(self, x, in_feature):
        xc = jnp.concatenate((x, in_feature), axis=1)
        n, c, l = xc.shape
        s = self.upsample
        x_up = jnp.broadcast_to(xc[:, :, :, None], (n, c, l, s)).reshape(n, c, l * s)
        total = self.kernel_size - 1
        left = total // 2
        right = total - left
        out = lax.conv_general_dilated(
            x_up, self.weight, window_strides=(1,), padding=[(left, right)],
            dimension_numbers=("NCH", "OIH", "NCH"))
        return out + self.bias[None, :, None]


if __name__ == "__main__":
    key = jax.random.PRNGKey(0)

    # --- case 1: toy shapes (single L tile, upsample=2) ------------------------------
    k_x, k_f, k_p, key = jax.random.split(key, 4)
    batch, c1, c2, length = 2, 4, 4, 16
    layer = Upsample1DLayerMulti(c1 + c2, 16, 5, stride=1, upsample=2, key=k_p)
    x = jax.random.normal(k_x, (batch, c1, length), jnp.float32)
    f = jax.random.normal(k_f, (batch, c2, length), jnp.float32)
    out = jax.block_until_ready(layer(x, f))
    ref = jax.block_until_ready(layer.reference(x, f))
    assert out.shape == (batch, 16, length * 2), out.shape
    assert jnp.allclose(out, ref, atol=5e-2, rtol=5e-2), \
        float(jnp.max(jnp.abs(out - ref)))

    # --- case 2: K=25 / upsample=5 / multi L-tile path (halo + tail padding) ---------
    k_x, k_f, k_p, key = jax.random.split(key, 4)
    batch, c1, c2, length = 2, 4, 4, 640
    layer2 = Upsample1DLayerMulti(c1 + c2, 16, 25, stride=1, upsample=5, key=k_p)
    x2 = jax.random.normal(k_x, (batch, c1, length), jnp.float32)
    f2 = jax.random.normal(k_f, (batch, c2, length), jnp.float32)
    out2 = jax.block_until_ready(layer2(x2, f2, length_tile=256))  # 3 lane-dense tiles
    ref2 = jax.block_until_ready(layer2.reference(x2, f2))
    assert out2.shape == (batch, 16, length * 5), out2.shape
    assert jnp.allclose(out2, ref2, atol=5e-2, rtol=5e-2), \
        float(jnp.max(jnp.abs(out2 - ref2)))

    print("KERNEL_OK")
</pallas_src>

<mosaic_0001>
module attributes {stable_mosaic.version = 11 : i64} {
  func.func @kernel(%arg0: i32, %arg1: i32, %arg2: memref<1x1x16x18xbf16, #tpu.memory_space<vmem>>, %arg3: memref<32x48xbf16, #tpu.memory_space<vmem>>, %arg4: memref<1x1x32x16xbf16, #tpu.memory_space<vmem>>) attributes {dimension_semantics = [#tpu.dimension_semantics<parallel>, #tpu.dimension_semantics<parallel>], iteration_bounds = array<i64: 2, 1>, scalar_prefetch = 0 : i64, scratch_operands = 0 : i64, tpu.core_type = #tpu.core_type<tc>, window_params = [{transform_indices = @transform_0, window_bounds = array<i64: 1, 1, 16, 18>}, {pipeline_mode = #tpu.pipeline_mode<synchronous>, transform_indices = @transform_1, window_bounds = array<i64: 32, 48>}, {transform_indices = @transform_2, window_bounds = array<i64: 1, 1, 32, 16>}]} {
    %c0 = arith.constant 0 : index
    %c0_0 = arith.constant 0 : index
    %c0_1 = arith.constant 0 : index
    %c0_2 = arith.constant 0 : index
    %0 = vector.load %arg2[%c0, %c0_0, %c0_1, %c0_2] : memref<1x1x16x18xbf16, #tpu.memory_space<vmem>>, vector<1x1x16x18xbf16>
    %1 = vector.shape_cast %0 : vector<1x1x16x18xbf16> to vector<16x18xbf16>
    %2 = vector.extract_strided_slice %1 {offsets = [0, 0], sizes = [16, 16], strides = [1, 1]} : vector<16x18xbf16> to vector<16x16xbf16>
    %3 = vector.extract_strided_slice %1 {offsets = [0, 1], sizes = [16, 16], strides = [1, 1]} : vector<16x18xbf16> to vector<16x16xbf16>
    %4 = vector.extract_strided_slice %1 {offsets = [0, 2], sizes = [16, 16], strides = [1, 1]} : vector<16x18xbf16> to vector<16x16xbf16>
    %5 = tpu.concatenate %2, %3, %4 in 0 : vector<16x16xbf16>, vector<16x16xbf16>, vector<16x16xbf16> -> vector<48x16xbf16>
    %c0_3 = arith.constant 0 : index
    %c0_4 = arith.constant 0 : index
    %6 = vector.load %arg3[%c0_3, %c0_4] : memref<32x48xbf16, #tpu.memory_space<vmem>>, vector<32x48xbf16>
    %cst = arith.constant dense<0.000000e+00> : vector<32x16xf32>
    %7 = tpu.matmul %6, %5, %cst {dimension_numbers = #tpu.dot_dimension_numbers<[1], [0], [0], [1], [0, 0, 1, 1], [], []>} : vector<32x48xbf16>, vector<48x16xbf16>, vector<32x16xf32> -> vector<32x16xf32>
    %8 = arith.truncf %7 : vector<32x16xf32> to vector<32x16xbf16>
    %c0_5 = arith.constant 0 : index
    %c0_6 = arith.constant 0 : index
    %c0_7 = arith.constant 0 : index
    %c0_8 = arith.constant 0 : index
    %9 = vector.load %arg4[%c0_5, %c0_6, %c0_7, %c0_8] : memref<1x1x32x16xbf16, #tpu.memory_space<vmem>>, vector<1x1x32x16xbf16>
    %10 = vector.shape_cast %9 : vector<1x1x32x16xbf16> to vector<32x16xbf16>
    %11 = vector.shape_cast %8 : vector<32x16xbf16> to vector<1x1x32x16xbf16>
    tpu.vector_store %arg4[%c0_5, %c0_6, %c0_7, %c0_8], %11 {strides = array<i32>} : memref<1x1x32x16xbf16, #tpu.memory_space<vmem>>, vector<1x1x32x16xbf16>,
    return
  }
  func.func @transform_0(%arg0: i32, %arg1: i32) -> (i32, i32, i32, i32) {
    %c0_i32 = arith.constant 0 : i32
    %c0_i32_0 = arith.constant 0 : i32
    %c0_i32_1 = arith.constant 0 : i32
    return %arg0, %arg1, %c0_i32, %c0_i32_0 : i32, i32, i32, i32
  }
  func.func @transform_1(%arg0: i32, %arg1: i32) -> (i32, i32) {
    %c0_i32 = arith.constant 0 : i32
    %c0_i32_0 = arith.constant 0 : i32
    %c0_i32_1 = arith.constant 0 : i32
    return %c0_i32, %c0_i32_0 : i32, i32
  }
  func.func @transform_2(%arg0: i32, %arg1: i32) -> (i32, i32, i32, i32) {
    %c0_i32 = arith.constant 0 : i32
    %c0_i32_0 = arith.constant 0 : i32
    %c0_i32_1 = arith.constant 0 : i32
    return %arg0, %arg1, %c0_i32, %c0_i32_0 : i32, i32, i32, i32
  }
}

</mosaic_0001>

<llo_original>
// kernel: upsample_conv1d_polyphase.1
$region0: #{upsample_conv1d_polyphase.1}
  #allocation0 [shape = 'u32[]', space=smem, size = 0x4, offset = 0x4, fixed_abs, tag = 'smem constant byte address 0x4 - core index']
  #allocation1 [shape = 'u32[144,128]{1,0:T(1,128)}', space=vmem, size = 0x12000, scoped, tag = 'internal scratch']
  %s0 = inlined_call_operand.vmem [shape: bf16[2,1,16,18], index: 0, kind: input, shape index: {}]
  %s1 = inlined_call_operand.vmem [shape: bf16[32,48], index: 1, kind: input, shape index: {}]
  %s2 = inlined_call_operand.vmem [shape: bf16[2,1,32,16], index: 2, kind: output, shape index: {}]
  %s3 = sld [smem:[#allocation0]]
  $region41: #{upsample_conv1d_polyphase.1} parent=0
    _
  %s5 = ssub.s32 1, %s3
  %s6 = scalar_select 0, %s5, %s3
  loop: start=0, step=1, limit=4
  $region2: #{upsample_conv1d_polyphase.1} parent=0 // loop_pre_header
    _
  $region3: #{upsample_conv1d_polyphase.1} parent=0 // loop_header
    %s8 = sphi 0, %s12
    %p9 = scmp.ge.s32.totalorder %s8, 4
    %s15 = sphi 0, %s27
    %s16 = sphi 0, %s23
    %s17 = sphi 0, %s15
    %s18 = sphi 0, %s16
    %s19 = sphi 0, %s17
    %s20 = sphi 0, %s18
    %s32 = sphi 0, %s34
    %s35 = sphi 0, %s32
    %s36 = sphi 0, %s35
    %s52 = sphi 0, %s36
    %s56 = sphi 0, %s56
    %s58 = sphi 0, %s56
    %s59 = sphi 0, %s58
    %s73 = sphi 0, %s59
    %s81 = sphi 0, %s83
    %s84 = sphi 0, %s81
    %s85 = sphi 0, %s84
    %s101 = sphi 0, %s85
  $region4: #{upsample_conv1d_polyphase.1} parent=0 // loop_header_branch
    %11 = sbr.rel (%p9) target = $region8
  $region5: #{upsample_conv1d_polyphase.1} parent=0 // loop_body
    %s13 = ssub.s32 %s8, 1
    %s14 = ssub.s32 %s8, 2
    %s21 = sadd.s32 1, %s16
    %p22 = scmp.ge.s32.totalorder %s21, 1
    %s23 = scalar_select %p22, 0, %s21
    %s24 = sadd.s32 1, %s15
    %s25 = scalar_select %p22, %s24, %s15
    %p26 = scmp.ge.s32.totalorder %s25, 2
    %s27 = scalar_select %p26, 0, %s25
    %s28 = ssub.s32 %s15, %s27
    %s29 = ssub.s32 %s16, %s23
    %s30 = sor.u32 %s28, %s29
    %p31 = scmp.eq.s32.totalorder %s30, 0
    %s33 = sadd.s32 %s32, 1
    %s34 = scalar_select %p31, %s32, %s33
    %p37 = pneg %p31
    %p38 = scmp.eq.s32.totalorder %s8, 1
    %p39 = por %p37, %p38
    %p40 = scmp.ne.s32.totalorder %s32, %s35
    %p41 = scmp.eq.s32.totalorder %s8, 0
    %p42 = por %p40, %p41
    %p43 = scmp.ne.s32.totalorder %s32, %s35
    %p44 = scmp.eq.s32.totalorder %s13, 1
    %p45 = por %p43, %p44
    %p46 = scmp.ne.s32.totalorder %s35, %s36
    %p47 = scmp.eq.s32.totalorder %s13, 0
    %p48 = por %p46, %p47
    %p49 = scmp.ne.s32.totalorder %s35, %s36
    %p50 = scmp.eq.s32.totalorder %s14, 1
    %p51 = por %p49, %p50
    %p53 = scmp.ne.s32.totalorder %s36, %s52
    %p54 = scmp.eq.s32.totalorder %s14, 0
    %p55 = por %p53, %p54
    %s57 = sadd.s32 %s56, 1
    %p60 = scmp.eq.s32.totalorder %s8, 1
    %p61 = scmp.ne.s32.totalorder %s56, %s58
    %p62 = scmp.eq.s32.totalorder %s8, 0
    %p63 = por %p61, %p62
    %p64 = scmp.ne.s32.totalorder %s56, %s58
    %p65 = scmp.eq.s32.totalorder %s13, 1
    %p66 = por %p64, %p65
    %p67 = scmp.ne.s32.totalorder %s58, %s59
    %p68 = scmp.eq.s32.totalorder %s13, 0
    %p69 = por %p67, %p68
    %p70 = scmp.ne.s32.totalorder %s58, %s59
    %p71 = scmp.eq.s32.totalorder %s14, 1
    %p72 = por %p70, %p71
    %p74 = scmp.ne.s32.totalorder %s59, %s73
    %p75 = scmp.eq.s32.totalorder %s14, 0
    %p76 = por %p74, %p75
    %s77 = ssub.s32 %s15, %s27
    %s78 = ssub.s32 %s16, %s23
    %s79 = sor.u32 %s77, %s78
    %p80 = scmp.eq.s32.totalorder %s79, 0
    %s82 = sadd.s32 %s81, 1
    %s83 = scalar_select %p80, %s81, %s82
    %p86 = pneg %p80
    %p87 = scmp.eq.s32.totalorder %s8, 1
    %p88 = por %p86, %p87
    %p89 = scmp.ne.s32.totalorder %s81, %s84
    %p90 = scmp.eq.s32.totalorder %s8, 0
    %p91 = por %p89, %p90
    %p92 = scmp.ne.s32.totalorder %s81, %s84
    %p93 = scmp.eq.s32.totalorder %s13, 1
    %p94 = por %p92, %p93
    %p95 = scmp.ne.s32.totalorder %s84, %s85
    %p96 = scmp.eq.s32.totalorder %s13, 0
    %p97 = por %p95, %p96
    %p98 = scmp.ne.s32.totalorder %s84, %s85
    %p99 = scmp.eq.s32.totalorder %s14, 1
    %p100 = por %p98, %p99
    %p102 = scmp.ne.s32.totalorder %s85, %s101
    %p103 = scmp.eq.s32.totalorder %s14, 0
    %p104 = por %p102, %p103
    %p105 = scmp.le.s32.totalorder 1, %s8
    %p106 = scmp.lt.s32.totalorder %s8, 3
    %p107 = pnand %p105, %p106
    %p108 = pneg %p107
    // Predicated region
    $region9: #{upsample_conv1d_polyphase.1} parent=5 // pred_check
      _
    $region10: #{upsample_conv1d_polyphase.1} parent=5 // pred_check_branch
      %110 = sbr.rel (%p107) target = $region12
    $region11: #{upsample_conv1d_polyphase.1} parent=5 // pred_region
      %s111 = ssub.s32 %s8, 1
      // Predicated region
      $region13: #{upsample_conv1d_polyphase.1} parent=11 // pred_check
        %p112 = pneg %p69
      $region14: #{upsample_conv1d_polyphase.1} parent=11 // pred_check_branch
        %114 = sbr.rel (%p112) target = $region16
      $region15: #{upsample_conv1d_polyphase.1} parent=11 // pred_region
        _
      $region16: #{upsample_conv1d_polyphase.1} parent=11 // pred_fallthru
        _
    $region12: #{upsample_conv1d_polyphase.1} parent=5 // pred_fallthru
      _
    %p115 = scmp.lt.s32.totalorder %s8, 2
    // Predicated region
    $region17: #{upsample_conv1d_polyphase.1} parent=5 // pred_check
      %p116 = pneg %p115
    $region18: #{upsample_conv1d_polyphase.1} parent=5 // pred_check_branch
      %118 = sbr.rel (%p116) target = $region20
    $region19: #{upsample_conv1d_polyphase.1} parent=5 // pred_region
      // Predicated region
      $region21: #{upsample_conv1d_polyphase.1} parent=19 // pred_check
        %p119 = pneg %p42
      $region22: #{upsample_conv1d_polyphase.1} parent=19 // pred_check_branch
        %121 = sbr.rel (%p119) target = $region24
      $region23: #{upsample_conv1d_polyphase.1} parent=19 // pred_region
        %p122 = scmp.lt.s32.totalorder %s15, 1
        %s123 = scalar_select %p122, %s15, 1
        %p124 = scmp.lt.s32.totalorder %s16, 0
        %s125 = scalar_select %p124, %s16, 0
        %s126 = smul.addr %s125, 2
        %s127 = smul.addr %s123, 2
        %s128 = sadd.s32 %s126, %s127
        %s129 = smul.addr %s128, 4
        %s130 = scalar_lea.vmem %s0, %s129
      $region24: #{upsample_conv1d_polyphase.1} parent=19 // pred_fallthru
        _
    $region20: #{upsample_conv1d_polyphase.1} parent=5 // pred_fallthru
      _
    %p131 = scmp.le.s32.totalorder 1, %s8
    %p132 = scmp.lt.s32.totalorder %s8, 3
    %p133 = pnand %p131, %p132
    %p134 = pneg %p133
    // Predicated region
    $region25: #{upsample_conv1d_polyphase.1} parent=5 // pred_check
      _
    $region26: #{upsample_conv1d_polyphase.1} parent=5 // pred_check_branch
      %136 = sbr.rel (%p133) target = $region28
    $region27: #{upsample_conv1d_polyphase.1} parent=5 // pred_region
      %s137 = ssub.s32 %s8, 1
      %p138 = scmp.lt.s32.totalorder %s17, 1
      %s139 = scalar_select %p138, %s17, 1
      %p140 = scmp.lt.s32.totalorder %s18, 0
      %s141 = scalar_select %p140, %s18, 0
      %s142 = smul.addr %s141, 2
      %s143 = smul.addr %s139, 2
      %s144 = sadd.s32 %s142, %s143
      %s145 = smul.addr %s144, 4
      %s146 = scalar_lea.vmem %s0, %s145
      %p147 = pneg %p48
      %p148 = pneg %p45
      %p149 = pneg %p69
      %p150 = pneg %p66
      %p151 = pneg %p97
      %p152 = pneg %p94
      %p153 = scmp.lt.s32.totalorder %s17, 1
      %s154 = scalar_select %p153, %s17, 1
      %p155 = scmp.lt.s32.totalorder %s18, 0
      %s156 = scalar_select %p155, %s18, 0
      %s157 = smul.addr %s156, 4
      %s158 = smul.addr %s154, 4
      %s159 = sadd.s32 %s157, %s158
      %s160 = smul.addr %s159, 4
      %s161 = scalar_lea.vmem %s2, %s160
      %p162 = scmp.lt.s32.totalorder %s17, 1
      %s163 = scalar_select %p162, %s17, 1
      %p164 = scmp.lt.s32.totalorder %s18, 0
      %s165 = scalar_select %p164, %s18, 0
      %s166 = smul.addr %s165, 2
      %s167 = smul.addr %s163, 2
      %s168 = sadd.s32 %s166, %s167
      %s169 = smul.addr %s168, 4
      %s170 = scalar_lea.vmem %s0, %s169
      %p171 = scmp.lt.s32.totalorder %s17, 1
      %s172 = scalar_select %p171, %s17, 1
      %p173 = scmp.lt.s32.totalorder %s18, 0
      %s174 = scalar_select %p173, %s18, 0
      %s175 = smul.addr %s174, 4
      %s176 = smul.addr %s172, 4
      %s177 = sadd.s32 %s175, %s176
      %s178 = smul.addr %s177, 4
      %s179 = scalar_lea.vmem %s2, %s178
      %v181 = vld [vmem:[%s170] sm:$0xf]
      %v182 = vld [vmem:[%s170 + $0x4] sm:$0xf]
      %v185 = vunpack.c.l.b16 %v181
      %v186 = vunpack.c.l.b16 %v182
      %v187 = vpack.c.b16 %v186, %v185
      %189 = vrot.lane.b32.xlu0 %v187, 127
      %v190 = vpop.permute.xlu0 %189
      %192 = vrot.lane.b32.xlu0 %v187, 126
      %v193 = vpop.permute.xlu0 %192
      %v195 = vld [vmem:[%s1] sm:$0xf]
      %v196 = vld [vmem:[%s1 + $0x4] sm:$0xf]
      %v197 = vld [vmem:[%s1 + $0x8] sm:$0xf]
      %v198 = vld [vmem:[%s1 + $0xc] sm:$0xf]
      %v203 = vunpack.c.l.b16 %v195
      %v204 = vunpack.c.l.b16 %v196
      %v205 = vunpack.c.l.b16 %v197
      %v206 = vunpack.c.l.b16 %v198
      %v207 = vpack.c.b16 %v204, %v203
      %v208 = vpack.c.b16 %v206, %v205
      %vm209 = vcmask 392192
      %v211 = vsel %vm209, %v207, 0
      %v214 = vsel %vm209, %v208, 0
      %216 = vmatprep.subr.bf16.mxu0 0
      %217 = vmatpush1.bf16.msra.mxu0 %v187
      %218 = vmatprep.subr.bf16.mxu0 0
      %219 = vmatpush1.bf16.msra.mxu0 %v190
      %220 = vmatprep.subr.bf16.mxu0 0
      %221 = vmatpush1.bf16.msra.mxu0 %v193
      %222 = vmatprep.subr.bf16.mxu0 0
      %223 = vmatpush1.bf16.msra.mxu0 0
      %224 = vmatprep.subr.bf16.mxu0 0
      %225 = vmatpush1.bf16.msra.mxu0 0
      %226 = vmatprep.subr.bf16.mxu0 0
      %227 = vmatpush1.bf16.msra.mxu0 0
      %228 = vmatprep.subr.bf16.mxu0 0
      %229 = vmatpush1.bf16.msra.mxu0 0
      %230 = vmatprep.subr.bf16.mxu0 0
      %231 = vmatpush1.bf16.msra.mxu0 0
      %232 = vmatprep.subr.bf16.mxu0 0
      %233 = vmatpush1.bf16.msra.mxu0 0
      %234 = vmatprep.subr.bf16.mxu0 0
      %235 = vmatpush1.bf16.msra.mxu0 0
      %236 = vmatprep.subr.bf16.mxu0 0
      %237 = vmatpush1.bf16.msra.mxu0 0
      %238 = vmatprep.subr.bf16.mxu0 0
      %239 = vmatpush1.bf16.msra.mxu0 0
      %240 = vmatprep.subr.bf16.mxu0 0
      %241 = vmatpush1.bf16.msra.mxu0 0
      %242 = vmatprep.subr.bf16.mxu0 0
      %243 = vmatpush1.bf16.msra.mxu0 0
      %244 = vmatprep.subr.bf16.mxu0 0
      %245 = vmatpush1.bf16.msra.mxu0 0
      %246 = vmatprep.subr.bf16.mxu0 0
      %247 = vmatpush1.bf16.msra.mxu0 0
      %248 = vmatprep.mubr.bf16.mxu0 0
      %249 = vmatmul.mubr.bf16.gmra.mrb[0].mxu0 %v211
      %v250 = vpop.f32.mrb[0].mxu0
      %v251 = vadd.f32 0.0, %v250
      %v252 = vpop.f32.mrb[0].mxu0
      %v253 = vpop.f32.mrb[0].mxu0
      %v254 = vadd.f32 0.0, %v253
      %v255 = vpop.f32.mrb[0].mxu0
      %256 = vmatprep.mubr.bf16.mxu0 0
      %257 = vmatmul.mubr.bf16.gmra.mrb[0].mxu0 %v214
      %v258 = vpop.f32.mrb[0].mxu0
      %v259 = vadd.f32 0.0, %v258
      %v260 = vpop.f32.mrb[0].mxu0
      %v261 = vpop.f32.mrb[0].mxu0
      %v262 = vadd.f32 0.0, %v261
      %v263 = vpop.f32.mrb[0].mxu0
      %264 = vdwg.mxu0
      %v265 = vpack.c.bf16 %v254, %v251
      %v266 = vpack.c.bf16 %v262, %v259
      %v269 = vunpack.c.l.b16 %v265
      %v270 = vunpack.c.h.b16 %v265
      %v271 = vunpack.c.l.b16 %v266
      %v272 = vunpack.c.h.b16 %v266
      %v273 = vpack.c.b16 %v269, %v269
      %v274 = vpack.c.b16 %v270, %v270
      %v275 = vpack.c.b16 %v271, %v271
      %v276 = vpack.c.b16 %v272, %v272
      %vm281 = vcmask 125952
      %282 = vst.msk [vmem:[%s179] sm:$0xf] %vm281, %v273
      %283 = vst.msk [vmem:[%s179 + $0x4] sm:$0xf] %vm281, %v274
      %284 = vst.msk [vmem:[%s179 + $0x8] sm:$0xf] %vm281, %v275
      %285 = vst.msk [vmem:[%s179 + $0xc] sm:$0xf] %vm281, %v276
      %p286 = scmp.lt.s32.totalorder %s17, 1
      %s287 = scalar_select %p286, %s17, 1
      %p288 = scmp.lt.s32.totalorder %s18, 0
      %s289 = scalar_select %p288, %s18, 0
      %s290 = smul.addr %s289, 4
      %s291 = smul.addr %s287, 4
      %s292 = sadd.s32 %s290, %s291
      %s293 = smul.addr %s292, 4
      %s294 = scalar_lea.vmem %s2, %s293
      // Predicated region
      $region29: #{upsample_conv1d_polyphase.1} parent=27 // pred_check
        %p295 = pneg %p94
      $region30: #{upsample_conv1d_polyphase.1} parent=27 // pred_check_branch
        %297 = sbr.rel (%p295) target = $region32
      $region31: #{upsample_conv1d_polyphase.1} parent=27 // pred_region
        _
      $region32: #{upsample_conv1d_polyphase.1} parent=27 // pred_fallthru
        _
    $region28: #{upsample_conv1d_polyphase.1} parent=5 // pred_fallthru
      _
    %p298 = scmp.le.s32.totalorder 2, %s8
    // Predicated region
    $region33: #{upsample_conv1d_polyphase.1} parent=5 // pred_check
      %p299 = pneg %p298
    $region34: #{upsample_conv1d_polyphase.1} parent=5 // pred_check_branch
      %301 = sbr.rel (%p299) target = $region36
    $region35: #{upsample_conv1d_polyphase.1} parent=5 // pred_region
      %s302 = ssub.s32 %s8, 2
      // Predicated region
      $region37: #{upsample_conv1d_polyphase.1} parent=35 // pred_check
        %p303 = pneg %p100
      $region38: #{upsample_conv1d_polyphase.1} parent=35 // pred_check_branch
        %305 = sbr.rel (%p303) target = $region40
      $region39: #{upsample_conv1d_polyphase.1} parent=35 // pred_region
        %p306 = scmp.lt.s32.totalorder %s19, 1
        %s307 = scalar_select %p306, %s19, 1
        %p308 = scmp.lt.s32.totalorder %s20, 0
        %s309 = scalar_select %p308, %s20, 0
        %s310 = smul.addr %s309, 4
        %s311 = smul.addr %s307, 4
        %s312 = sadd.s32 %s310, %s311
        %s313 = smul.addr %s312, 4
        %s314 = scalar_lea.vmem %s2, %s313
      $region40: #{upsample_conv1d_polyphase.1} parent=35 // pred_fallthru
        _
    $region36: #{upsample_conv1d_polyphase.1} parent=5 // pred_fallthru
      _
  $region6: #{upsample_conv1d_polyphase.1} parent=0 // loop_footer
    %s12 = sadd.s32 1, %s8
  $region7: #{upsample_conv1d_polyphase.1} parent=0 // loop_footer_branch
    %7 = sbr.rel target = $region3
  $region8: #{upsample_conv1d_polyphase.1} parent=0 // loop_exit
    _

</llo_original>
